<compile_context>
chip_gen: v6e
topology: v6e:2x2x1
jax: 0.10.0
libtpu: 0.0.40
codegen_flags: <defaults>
</compile_context>

<pallas_src>
import functools
import math

import jax
import jax.numpy as jnp
from jax.experimental import pallas as pl
from jax.experimental.pallas import tpu as pltpu


# ----------------------------------------------------------------------------
# Elementwise helpers (built only from exp / mul / add / where so they are
# guaranteed to lower in Mosaic; A&S 7.1.26 erf, max abs err ~1.5e-7).
# ----------------------------------------------------------------------------
def _erf(x):
    p = 0.3275911
    a1, a2, a3, a4, a5 = (0.254829592, -0.284496736, 1.421413741,
                          -1.453152027, 1.061405429)
    ax = jnp.where(x >= 0, x, -x)
    t = 1.0 / (1.0 + p * ax)
    poly = ((((a5 * t + a4) * t + a3) * t + a2) * t + a1) * t
    e = 1.0 - poly * jnp.exp(-ax * ax)
    return jnp.where(x >= 0, e, -e)


def _gelu(x):
    # erf-form gelu, matching the PyTorch reference (hidden_act='gelu').
    return x * 0.5 * (1.0 + _erf(x * (1.0 / math.sqrt(2.0))))


# ----------------------------------------------------------------------------
# Kernel 1: BertLMPredictionHead (transform + decoder), fused.
# ----------------------------------------------------------------------------
def mlm_head_kernel(x_ref, wd_ref, bd_ref, g_ref, beta_ref, wv_ref, bv_ref,
                    o_ref, t_ref, *, eps):
    # Transform (dense + gelu + LayerNorm) only once per M-tile: at the first
    # vocab tile. Result persists in the VMEM scratch across the V grid axis.
    @pl.when(pl.program_id(1) == 0)
    def _():
        h = jnp.dot(x_ref[...], wd_ref[...], preferred_element_type=jnp.float32)
        h = h + bd_ref[...].astype(jnp.float32)
        h = _gelu(h)
        mu = jnp.mean(h, axis=-1, keepdims=True)
        var = jnp.mean(jnp.square(h - mu), axis=-1, keepdims=True)
        hn = (h - mu) * jax.lax.rsqrt(var + eps)
        t_ref[...] = (hn * g_ref[...].astype(jnp.float32)
                      + beta_ref[...].astype(jnp.float32))

    # Decoder projection for this vocab tile.
    logits = jnp.dot(t_ref[...].astype(wv_ref.dtype), wv_ref[...],
                     preferred_element_type=jnp.float32)
    o_ref[...] = (logits + bv_ref[...].astype(jnp.float32)).astype(o_ref.dtype)


def mlm_head(x2d, dense_w, dense_b, ln_g, ln_b, decoder_w, decoder_b,
             *, eps=1e-12, tm=256, tv=512):
    """x2d: [M, H] (flattened sequence); decoder_w: [V, H] (embedding weights)."""
    M, H = x2d.shape
    V = decoder_w.shape[0]
    tm = min(tm, M)
    tv = min(tv, V)
    # Tile-size notes: keep tm*H and H*tv double-buffered well under VMEM
    # (budget against v7x's 64 MiB, not 128 MiB, when scaling V tiles up).
    assert M % tm == 0 and (tm % 8 == 0 or tm == M), (M, tm)
    assert V % tv == 0 and (tv % 128 == 0 or tv == V), (V, tv)

    wd_t = jnp.transpose(dense_w)       # [H, H]
    bd = dense_b.reshape(1, H)
    g = ln_g.reshape(1, H)
    beta = ln_b.reshape(1, H)
    wv_t = jnp.transpose(decoder_w)     # [H, V]
    bv = decoder_b.reshape(1, V)

    isz = x2d.dtype.itemsize
    cost = pl.CostEstimate(
        flops=2 * M * H * H + 2 * M * H * V,
        transcendentals=M * H,
        bytes_accessed=(M * H + H * H + H * V + M * V + 3 * H + V) * isz)

    return pl.pallas_call(
        functools.partial(mlm_head_kernel, eps=eps),
        out_shape=jax.ShapeDtypeStruct((M, V), x2d.dtype),
        grid_spec=pltpu.PrefetchScalarGridSpec(
            num_scalar_prefetch=0,
            grid=(M // tm, V // tv),
            in_specs=[
                pl.BlockSpec((tm, H), lambda m, v: (m, 0)),   # x tile
                pl.BlockSpec((H, H), lambda m, v: (0, 0)),    # dense W^T (resident)
                pl.BlockSpec((1, H), lambda m, v: (0, 0)),    # dense bias
                pl.BlockSpec((1, H), lambda m, v: (0, 0)),    # LN gamma
                pl.BlockSpec((1, H), lambda m, v: (0, 0)),    # LN beta
                pl.BlockSpec((H, tv), lambda m, v: (0, v)),   # decoder W^T tile
                pl.BlockSpec((1, tv), lambda m, v: (0, v)),   # decoder bias tile
            ],
            out_specs=pl.BlockSpec((tm, tv), lambda m, v: (m, v)),
            scratch_shapes=[pltpu.VMEM((tm, H), jnp.float32)],
        ),
        compiler_params=pltpu.CompilerParams(
            dimension_semantics=("parallel", "arbitrary")),
        cost_estimate=cost,
    )(x2d, wd_t, bd, g, beta, wv_t, bv)


# ----------------------------------------------------------------------------
# Kernel 2: NSP head (nn.Linear(H, 2)), lane-padded output.
# ----------------------------------------------------------------------------
_NSP_LANES = 128  # pad the 2-wide output to a full lane register (unmasked stores)


def nsp_head_kernel(x_ref, w_ref, b_ref, o_ref):
    acc = jnp.dot(x_ref[...], w_ref[...], preferred_element_type=jnp.float32)
    o_ref[...] = (acc + b_ref[...].astype(jnp.float32)).astype(o_ref.dtype)


def nsp_head(pooled, nsp_w, nsp_b, *, tb=512):
    """pooled: [B, H]; nsp_w: [2, H]; nsp_b: [2] -> [B, 2]."""
    B, H = pooled.shape
    N = nsp_w.shape[0]
    npad = _NSP_LANES
    w_pad = jnp.pad(jnp.transpose(nsp_w), ((0, 0), (0, npad - N)))   # [H, 128]
    b_pad = jnp.pad(nsp_b, (0, npad - N)).reshape(1, npad)           # [1, 128]

    isz = pooled.dtype.itemsize
    cost = pl.CostEstimate(flops=2 * B * H * npad, transcendentals=0,
                           bytes_accessed=(B * H + H * npad + B * npad) * isz)

    if B <= tb:
        # Small batch: gridless call (no pipeline scaffolding), fully VMEM resident.
        out = pl.pallas_call(
            nsp_head_kernel,
            out_shape=jax.ShapeDtypeStruct((B, npad), pooled.dtype),
            in_specs=[pl.BlockSpec(memory_space=pltpu.MemorySpace.VMEM)] * 3,
            out_specs=pl.BlockSpec(memory_space=pltpu.MemorySpace.VMEM),
            cost_estimate=cost,
        )(pooled, w_pad, b_pad)
    else:
        # Large batch: tile the batch dim so the HBM read of `pooled` overlaps
        # compute; weights/bias stay resident. "parallel" lets v7x shard the
        # batch axis across its two TensorCores.
        assert B % tb == 0 and tb % 8 == 0, (B, tb)
        out = pl.pallas_call(
            nsp_head_kernel,
            out_shape=jax.ShapeDtypeStruct((B, npad), pooled.dtype),
            grid_spec=pltpu.PrefetchScalarGridSpec(
                num_scalar_prefetch=0,
                grid=(B // tb,),
                in_specs=[
                    pl.BlockSpec((tb, H), lambda i: (i, 0)),
                    pl.BlockSpec((H, npad), lambda i: (0, 0)),
                    pl.BlockSpec((1, npad), lambda i: (0, 0)),
                ],
                out_specs=pl.BlockSpec((tb, npad), lambda i: (i, 0)),
            ),
            compiler_params=pltpu.CompilerParams(
                dimension_semantics=("parallel",)),
            cost_estimate=cost,
        )(pooled, w_pad, b_pad)
    return out[:, :N]


# ----------------------------------------------------------------------------
# Module forward: BertPreTrainingHeads
# ----------------------------------------------------------------------------
def bert_pretraining_heads(sequence_output, pooled_output, params,
                           *, eps=1e-12, tm=256, tv=512, tb=512):
    B, S, H = sequence_output.shape
    x2d = sequence_output.reshape(B * S, H)
    pred2d = mlm_head(x2d, params["dense_w"], params["dense_b"],
                      params["ln_g"], params["ln_b"],
                      params["decoder_w"], params["decoder_b"],
                      eps=eps, tm=tm, tv=tv)
    prediction_scores = pred2d.reshape(B, S, -1)
    # TODO(synk): mpu.copy_to_model_parallel_region is an identity in the single-
    # device forward pass; model-parallel collectives / fp32_embedding .half()
    # dtype juggling are not emulated (demo runs fully in f32).
    seq_relationship_score = nsp_head(pooled_output, params["nsp_w"],
                                      params["nsp_b"], tb=tb)
    return prediction_scores, seq_relationship_score


# ----------------------------------------------------------------------------
# Reference (plain JAX, same math as the PyTorch module).
# ----------------------------------------------------------------------------
def _reference(sequence_output, pooled_output, params, eps):
    h = sequence_output @ params["dense_w"].T + params["dense_b"]
    h = h * 0.5 * (1.0 + jax.lax.erf(h / jnp.sqrt(2.0)))
    mu = h.mean(-1, keepdims=True)
    var = ((h - mu) ** 2).mean(-1, keepdims=True)
    h = (h - mu) / jnp.sqrt(var + eps)
    h = h * params["ln_g"] + params["ln_b"]
    pred = h @ params["decoder_w"].T + params["decoder_b"]
    nsp = pooled_output @ params["nsp_w"].T + params["nsp_b"]
    return pred, nsp


if __name__ == "__main__":
    key = jax.random.PRNGKey(0)
    ks = jax.random.split(key, 11)

    B, S, H, V = 2, 8, 32, 256
    eps = 1e-12
    bound = 1.0 / math.sqrt(H)

    params = dict(
        dense_w=jax.random.uniform(ks[0], (H, H), jnp.float32, -bound, bound),
        dense_b=jax.random.uniform(ks[1], (H,), jnp.float32, -bound, bound),
        ln_g=1.0 + 0.1 * jax.random.normal(ks[2], (H,), jnp.float32),
        ln_b=0.1 * jax.random.normal(ks[3], (H,), jnp.float32),
        decoder_w=0.02 * jax.random.normal(ks[4], (V, H), jnp.float32),
        decoder_b=0.01 * jax.random.normal(ks[5], (V,), jnp.float32),
        nsp_w=jax.random.uniform(ks[6], (2, H), jnp.float32, -bound, bound),
        nsp_b=jax.random.uniform(ks[7], (2,), jnp.float32, -bound, bound),
    )

    sequence_output = jax.random.normal(ks[8], (B, S, H), jnp.float32)
    pooled_output = jax.random.normal(ks[9], (B, H), jnp.float32)

    # Small tiles here purely to exercise the tiled (m, v) grid path; at real
    # sizes (H=768, V~30k) use larger tiles (e.g. tm=256, tv=512).
    pred, nsp = bert_pretraining_heads(sequence_output, pooled_output, params,
                                       eps=eps, tm=8, tv=128)
    pred, nsp = jax.block_until_ready((pred, nsp))

    ref_pred, ref_nsp = _reference(sequence_output, pooled_output, params, eps)

    assert pred.shape == (B, S, V) and nsp.shape == (B, 2)
    assert jnp.allclose(pred, ref_pred, atol=1e-4, rtol=1e-4), \
        float(jnp.max(jnp.abs(pred - ref_pred)))
    assert jnp.allclose(nsp, ref_nsp, atol=1e-4, rtol=1e-4), \
        float(jnp.max(jnp.abs(nsp - ref_nsp)))

    # Also exercise the batch-tiled NSP path (used for large serving batches).
    pooled_big = jax.random.normal(ks[10], (16, H), jnp.float32)
    nsp_big = jax.block_until_ready(
        nsp_head(pooled_big, params["nsp_w"], params["nsp_b"], tb=8))
    ref_big = pooled_big @ params["nsp_w"].T + params["nsp_b"]
    assert jnp.allclose(nsp_big, ref_big, atol=1e-4, rtol=1e-4)

    print("KERNEL_OK")
</pallas_src>

<mosaic_0001>
module attributes {stable_mosaic.version = 11 : i64} {
  func.func @mlm_head_kernel(%arg0: i32, %arg1: i32, %arg2: memref<8x32xf32, #tpu.memory_space<vmem>>, %arg3: memref<32x32xf32, #tpu.memory_space<vmem>>, %arg4: memref<1x32xf32, #tpu.memory_space<vmem>>, %arg5: memref<1x32xf32, #tpu.memory_space<vmem>>, %arg6: memref<1x32xf32, #tpu.memory_space<vmem>>, %arg7: memref<32x128xf32, #tpu.memory_space<vmem>>, %arg8: memref<1x128xf32, #tpu.memory_space<vmem>>, %arg9: memref<8x128xf32, #tpu.memory_space<vmem>>, %arg10: memref<8x32xf32, #tpu.memory_space<vmem>>) attributes {dimension_semantics = [#tpu.dimension_semantics<parallel>, #tpu.dimension_semantics<arbitrary>], iteration_bounds = array<i64: 2, 2>, scalar_prefetch = 0 : i64, scratch_operands = 1 : i64, tpu.core_type = #tpu.core_type<tc>, window_params = [{transform_indices = @transform_0, window_bounds = array<i64: 8, 32>}, {pipeline_mode = #tpu.pipeline_mode<synchronous>, transform_indices = @transform_1, window_bounds = array<i64: 32, 32>}, {pipeline_mode = #tpu.pipeline_mode<synchronous>, transform_indices = @transform_2, window_bounds = array<i64: 1, 32>}, {pipeline_mode = #tpu.pipeline_mode<synchronous>, transform_indices = @transform_3, window_bounds = array<i64: 1, 32>}, {pipeline_mode = #tpu.pipeline_mode<synchronous>, transform_indices = @transform_4, window_bounds = array<i64: 1, 32>}, {transform_indices = @transform_5, window_bounds = array<i64: 32, 128>}, {transform_indices = @transform_6, window_bounds = array<i64: 1, 128>}, {transform_indices = @transform_7, window_bounds = array<i64: 8, 128>}]} {
    %c0_i32 = arith.constant 0 : i32
    %0 = arith.cmpi eq, %arg1, %c0_i32 : i32
    %1 = arith.extui %0 : i1 to i32
    %c0_i32_0 = arith.constant 0 : i32
    %2 = arith.cmpi ne, %1, %c0_i32_0 : i32
    scf.if %2 {
      %c0_8 = arith.constant 0 : index
      %c0_9 = arith.constant 0 : index
      %10 = vector.load %arg2[%c0_8, %c0_9] : memref<8x32xf32, #tpu.memory_space<vmem>>, vector<8x32xf32>
      %c0_10 = arith.constant 0 : index
      %c0_11 = arith.constant 0 : index
      %11 = vector.load %arg3[%c0_10, %c0_11] : memref<32x32xf32, #tpu.memory_space<vmem>>, vector<32x32xf32>
      %cst_12 = arith.constant dense<0.000000e+00> : vector<8x32xf32>
      %12 = tpu.matmul %10, %11, %cst_12 {dimension_numbers = #tpu.dot_dimension_numbers<[1], [0], [0], [1], [0, 0, 1, 1], [], []>} : vector<8x32xf32>, vector<32x32xf32>, vector<8x32xf32> -> vector<8x32xf32>
      %c0_13 = arith.constant 0 : index
      %c0_14 = arith.constant 0 : index
      %13 = vector.load %arg4[%c0_13, %c0_14] : memref<1x32xf32, #tpu.memory_space<vmem>>, vector<1x32xf32>
      %14 = vector.broadcast %13 : vector<1x32xf32> to vector<8x32xf32>
      %15 = arith.addf %12, %14 : vector<8x32xf32>
      %cst_15 = arith.constant 5.000000e-01 : f32
      %16 = vector.broadcast %cst_15 : f32 to vector<8x32xf32>
      %17 = arith.mulf %15, %16 : vector<8x32xf32>
      %cst_16 = arith.constant 0.707106769 : f32
      %18 = vector.broadcast %cst_16 : f32 to vector<8x32xf32>
      %19 = arith.mulf %15, %18 : vector<8x32xf32>
      %cst_17 = arith.constant 0.000000e+00 : f32
      %20 = vector.broadcast %cst_17 : f32 to vector<8x32xf32>
      %21 = arith.cmpf oge, %19, %20 : vector<8x32xf32>
      %cst_18 = arith.constant 0.000000e+00 : f32
      %22 = vector.broadcast %cst_18 : f32 to vector<8x32xf32>
      %23 = arith.subf %22, %19 : vector<8x32xf32>
      %24 = arith.select %21, %19, %23 : vector<8x32xi1>, vector<8x32xf32>
      %cst_19 = arith.constant 0.327591091 : f32
      %25 = vector.broadcast %cst_19 : f32 to vector<8x32xf32>
      %26 = arith.mulf %25, %24 : vector<8x32xf32>
      %cst_20 = arith.constant 1.000000e+00 : f32
      %27 = vector.broadcast %cst_20 : f32 to vector<8x32xf32>
      %28 = arith.addf %27, %26 : vector<8x32xf32>
      %cst_21 = arith.constant 1.000000e+00 : f32
      %29 = vector.broadcast %cst_21 : f32 to vector<8x32xf32>
      %30 = arith.divf %29, %28 : vector<8x32xf32>
      %cst_22 = arith.constant 1.06140542 : f32
      %31 = vector.broadcast %cst_22 : f32 to vector<8x32xf32>
      %32 = arith.mulf %31, %30 : vector<8x32xf32>
      %cst_23 = arith.constant -1.45315206 : f32
      %33 = vector.broadcast %cst_23 : f32 to vector<8x32xf32>
      %34 = arith.addf %32, %33 : vector<8x32xf32>
      %35 = arith.mulf %34, %30 : vector<8x32xf32>
      %cst_24 = arith.constant 1.42141378 : f32
      %36 = vector.broadcast %cst_24 : f32 to vector<8x32xf32>
      %37 = arith.addf %35, %36 : vector<8x32xf32>
      %38 = arith.mulf %37, %30 : vector<8x32xf32>
      %cst_25 = arith.constant -0.284496725 : f32
      %39 = vector.broadcast %cst_25 : f32 to vector<8x32xf32>
      %40 = arith.addf %38, %39 : vector<8x32xf32>
      %41 = arith.mulf %40, %30 : vector<8x32xf32>
      %cst_26 = arith.constant 0.254829586 : f32
      %42 = vector.broadcast %cst_26 : f32 to vector<8x32xf32>
      %43 = arith.addf %41, %42 : vector<8x32xf32>
      %44 = arith.mulf %43, %30 : vector<8x32xf32>
      %cst_27 = arith.constant 0.000000e+00 : f32
      %45 = vector.broadcast %cst_27 : f32 to vector<8x32xf32>
      %46 = arith.subf %45, %24 : vector<8x32xf32>
      %47 = arith.mulf %46, %24 : vector<8x32xf32>
      %48 = math.exp %47 : vector<8x32xf32>
      %49 = arith.mulf %44, %48 : vector<8x32xf32>
      %cst_28 = arith.constant 1.000000e+00 : f32
      %50 = vector.broadcast %cst_28 : f32 to vector<8x32xf32>
      %51 = arith.subf %50, %49 : vector<8x32xf32>
      %cst_29 = arith.constant 0.000000e+00 : f32
      %52 = vector.broadcast %cst_29 : f32 to vector<8x32xf32>
      %53 = arith.cmpf oge, %19, %52 : vector<8x32xf32>
      %cst_30 = arith.constant 0.000000e+00 : f32
      %54 = vector.broadcast %cst_30 : f32 to vector<8x32xf32>
      %55 = arith.subf %54, %51 : vector<8x32xf32>
      %56 = arith.select %53, %51, %55 : vector<8x32xi1>, vector<8x32xf32>
      %cst_31 = arith.constant 1.000000e+00 : f32
      %57 = vector.broadcast %cst_31 : f32 to vector<8x32xf32>
      %58 = arith.addf %57, %56 : vector<8x32xf32>
      %59 = arith.mulf %17, %58 : vector<8x32xf32>
      %cst_32 = arith.constant dense<0.000000e+00> : vector<8xf32>
      %60 = vector.multi_reduction <add>, %59, %cst_32 [1] : vector<8x32xf32> to vector<8xf32>
      %61 = vector.shape_cast %60 : vector<8xf32> to vector<8x1xf32>
      %cst_33 = arith.constant 3.200000e+01 : f32
      %62 = vector.broadcast %cst_33 : f32 to vector<8x1xf32>
      %63 = arith.divf %61, %62 : vector<8x1xf32>
      %64 = vector.broadcast %63 : vector<8x1xf32> to vector<8x32xf32>
      %65 = arith.subf %59, %64 : vector<8x32xf32>
      %66 = arith.mulf %65, %65 : vector<8x32xf32>
      %cst_34 = arith.constant dense<0.000000e+00> : vector<8xf32>
      %67 = vector.multi_reduction <add>, %66, %cst_34 [1] : vector<8x32xf32> to vector<8xf32>
      %68 = vector.shape_cast %67 : vector<8xf32> to vector<8x1xf32>
      %cst_35 = arith.constant 3.200000e+01 : f32
      %69 = vector.broadcast %cst_35 : f32 to vector<8x1xf32>
      %70 = arith.divf %68, %69 : vector<8x1xf32>
      %71 = vector.broadcast %63 : vector<8x1xf32> to vector<8x32xf32>
      %72 = arith.subf %59, %71 : vector<8x32xf32>
      %cst_36 = arith.constant 9.99999996E-13 : f32
      %73 = vector.broadcast %cst_36 : f32 to vector<8x1xf32>
      %74 = arith.addf %70, %73 : vector<8x1xf32>
      %75 = math.rsqrt %74 : vector<8x1xf32>
      %76 = vector.broadcast %75 : vector<8x1xf32> to vector<8x32xf32>
      %77 = arith.mulf %72, %76 : vector<8x32xf32>
      %c0_37 = arith.constant 0 : index
      %c0_38 = arith.constant 0 : index
      %78 = vector.load %arg5[%c0_37, %c0_38] : memref<1x32xf32, #tpu.memory_space<vmem>>, vector<1x32xf32>
      %79 = vector.broadcast %78 : vector<1x32xf32> to vector<8x32xf32>
      %80 = arith.mulf %77, %79 : vector<8x32xf32>
      %c0_39 = arith.constant 0 : index
      %c0_40 = arith.constant 0 : index
      %81 = vector.load %arg6[%c0_39, %c0_40] : memref<1x32xf32, #tpu.memory_space<vmem>>, vector<1x32xf32>
      %82 = vector.broadcast %81 : vector<1x32xf32> to vector<8x32xf32>
      %83 = arith.addf %80, %82 : vector<8x32xf32>
      %c0_41 = arith.constant 0 : index
      %c0_42 = arith.constant 0 : index
      %84 = vector.load %arg10[%c0_41, %c0_42] : memref<8x32xf32, #tpu.memory_space<vmem>>, vector<8x32xf32>
      tpu.vector_store %arg10[%c0_41, %c0_42], %83 {strides = array<i32>} : memref<8x32xf32, #tpu.memory_space<vmem>>, vector<8x32xf32>,
    } else {
    }
    %c0 = arith.constant 0 : index
    %c0_1 = arith.constant 0 : index
    %3 = vector.load %arg10[%c0, %c0_1] : memref<8x32xf32, #tpu.memory_space<vmem>>, vector<8x32xf32>
    %c0_2 = arith.constant 0 : index
    %c0_3 = arith.constant 0 : index
    %4 = vector.load %arg7[%c0_2, %c0_3] : memref<32x128xf32, #tpu.memory_space<vmem>>, vector<32x128xf32>
    %cst = arith.constant dense<0.000000e+00> : vector<8x128xf32>
    %5 = tpu.matmul %3, %4, %cst {dimension_numbers = #tpu.dot_dimension_numbers<[1], [0], [0], [1], [0, 0, 1, 1], [], []>} : vector<8x32xf32>, vector<32x128xf32>, vector<8x128xf32> -> vector<8x128xf32>
    %c0_4 = arith.constant 0 : index
    %c0_5 = arith.constant 0 : index
    %6 = vector.load %arg8[%c0_4, %c0_5] : memref<1x128xf32, #tpu.memory_space<vmem>>, vector<1x128xf32>
    %7 = vector.broadcast %6 : vector<1x128xf32> to vector<8x128xf32>
    %8 = arith.addf %5, %7 : vector<8x128xf32>
    %c0_6 = arith.constant 0 : index
    %c0_7 = arith.constant 0 : index
    %9 = vector.load %arg9[%c0_6, %c0_7] : memref<8x128xf32, #tpu.memory_space<vmem>>, vector<8x128xf32>
    tpu.vector_store %arg9[%c0_6, %c0_7], %8 {strides = array<i32>} : memref<8x128xf32, #tpu.memory_space<vmem>>, vector<8x128xf32>,
    return
  }
  func.func @transform_0(%arg0: i32, %arg1: i32) -> (i32, i32) {
    %c0_i32 = arith.constant 0 : i32
    %c0_i32_0 = arith.constant 0 : i32
    return %arg0, %c0_i32 : i32, i32
  }
  func.func @transform_1(%arg0: i32, %arg1: i32) -> (i32, i32) {
    %c0_i32 = arith.constant 0 : i32
    %c0_i32_0 = arith.constant 0 : i32
    %c0_i32_1 = arith.constant 0 : i32
    return %c0_i32, %c0_i32_0 : i32, i32
  }
  func.func @transform_2(%arg0: i32, %arg1: i32) -> (i32, i32) {
    %c0_i32 = arith.constant 0 : i32
    %c0_i32_0 = arith.constant 0 : i32
    %c0_i32_1 = arith.constant 0 : i32
    return %c0_i32, %c0_i32_0 : i32, i32
  }
  func.func @transform_3(%arg0: i32, %arg1: i32) -> (i32, i32) {
    %c0_i32 = arith.constant 0 : i32
    %c0_i32_0 = arith.constant 0 : i32
    %c0_i32_1 = arith.constant 0 : i32
    return %c0_i32, %c0_i32_0 : i32, i32
  }
  func.func @transform_4(%arg0: i32, %arg1: i32) -> (i32, i32) {
    %c0_i32 = arith.constant 0 : i32
    %c0_i32_0 = arith.constant 0 : i32
    %c0_i32_1 = arith.constant 0 : i32
    return %c0_i32, %c0_i32_0 : i32, i32
  }
  func.func @transform_5(%arg0: i32, %arg1: i32) -> (i32, i32) {
    %c0_i32 = arith.constant 0 : i32
    %c0_i32_0 = arith.constant 0 : i32
    return %c0_i32, %arg1 : i32, i32
  }
  func.func @transform_6(%arg0: i32, %arg1: i32) -> (i32, i32) {
    %c0_i32 = arith.constant 0 : i32
    %c0_i32_0 = arith.constant 0 : i32
    return %c0_i32, %arg1 : i32, i32
  }
  func.func @transform_7(%arg0: i32, %arg1: i32) -> (i32, i32) {
    %c0_i32 = arith.constant 0 : i32
    return %arg0, %arg1 : i32, i32
  }
}

</mosaic_0001>

<llo_original>
// kernel: tpu_custom_call.1
$region0: #{tpu_custom_call.1}
  #allocation0 [shape = 'u32[]', space=smem, size = 0x4, offset = 0x4, fixed_abs, tag = 'smem constant byte address 0x4 - core index']
  #allocation1 [shape = 'u32[144,128]{1,0:T(1,128)}', space=vmem, size = 0x12000, scoped, tag = 'internal scratch']
  #allocation2 [shape = 'f32[8,32]{1,0:T(8,128)}', space=vmem, size = 0x1000, scoped, tag = 'scratch operand']
  %s0 = inlined_call_operand.hbm [shape: f32[16,32], index: 0, kind: input, shape index: {}]
  %s1 = inlined_call_operand.hbm [shape: f32[32,32], index: 1, kind: input, shape index: {}]
  %s2 = inlined_call_operand.vmem [shape: f32[1,32], index: 2, kind: input, shape index: {}]
  %s3 = inlined_call_operand.vmem [shape: f32[1,32], index: 3, kind: input, shape index: {}]
  %s4 = inlined_call_operand.vmem [shape: f32[1,32], index: 4, kind: input, shape index: {}]
  %s5 = inlined_call_operand.hbm [shape: f32[32,256], index: 5, kind: input, shape index: {}]
  %s6 = inlined_call_operand.vmem [shape: f32[1,256], index: 6, kind: input, shape index: {}]
  %s7 = inlined_call_operand.hbm [shape: f32[16,256], index: 7, kind: output, shape index: {}]
  %s8 = sld [smem:[#allocation0]]
  $region77: #{tpu_custom_call.1} parent=0
    _
  %s10 = ssub.s32 1, %s8
  %s11 = scalar_select 0, %s10, %s8
  $region1: #{tpu_custom_call.1} parent=0
    #allocation3 [shape = 'u8[8192]{0}', space=vmem, size = 0x2000, scoped, tag = 'input window, operand 0']
    #allocation4 [shape = 's32[2]{0}', space=sflag, size = 0x8, scoped, tag = 'scoped memory for tpu_custom_call.1']
    #allocation5 [shape = 's32[2]{0}', space=sflag, size = 0x8, scoped, tag = 'scoped memory for tpu_custom_call.1']
    #allocation6 [shape = 'u8[16384]{0}', space=vmem, size = 0x4000, scoped, tag = 'input window, operand 1, single buffered']
    #allocation7 [shape = 's32[1]{0}', space=sflag, size = 0x4, scoped, tag = 'scoped memory for tpu_custom_call.1']
    #allocation8 [shape = 'u8[32768]{0}', space=vmem, size = 0x8000, scoped, tag = 'input window, operand 5']
    #allocation9 [shape = 'u8[8192]{0}', space=vmem, size = 0x2000, scoped, tag = 'output window, operand 0']
    %12 = vsyncpa [#allocation4], 0
    %s13 = scalar_lea.sflag [#allocation4], 1
    %14 = vsyncpa %s13, 0
    %15 = vsyncpa [#allocation7], 0
    %16 = vsyncpa [#allocation5], 0
    %s17 = scalar_lea.sflag [#allocation5], 1
    %18 = vsyncpa %s17, 0
    loop: start=0, step=1, limit=6
    $region2: #{tpu_custom_call.1} parent=1 // loop_pre_header
      _
    $region3: #{tpu_custom_call.1} parent=1 // loop_header
      %s20 = sphi 0, %s24
      %p21 = scmp.ge.s32.totalorder %s20, 6
      %s27 = sphi 0, %s39
      %s28 = sphi 0, %s35
      %s29 = sphi 0, %s27
      %s30 = sphi 0, %s28
      %s31 = sphi 0, %s29
      %s32 = sphi 0, %s30
      %s42 = sphi 0, %s44
      %s45 = sphi 0, %s42
      %s46 = sphi 0, %s45
      %s62 = sphi 0, %s46
      %s66 = sphi 0, %s66
      %s68 = sphi 0, %s66
      %s69 = sphi 0, %s68
      %s83 = sphi 0, %s69
      %s87 = sphi 0, %s87
      %s89 = sphi 0, %s87
      %s90 = sphi 0, %s89
      %s104 = sphi 0, %s90
      %s108 = sphi 0, %s108
      %s110 = sphi 0, %s108
      %s111 = sphi 0, %s110
      %s125 = sphi 0, %s111
      %s129 = sphi 0, %s129
      %s131 = sphi 0, %s129
      %s132 = sphi 0, %s131
      %s146 = sphi 0, %s132
      %s152 = sphi 0, %s154
      %s155 = sphi 0, %s152
      %s156 = sphi 0, %s155
      %s172 = sphi 0, %s156
      %s178 = sphi 0, %s180
      %s181 = sphi 0, %s178
      %s182 = sphi 0, %s181
      %s198 = sphi 0, %s182
      %s206 = sphi 0, %s208
      %s209 = sphi 0, %s206
      %s210 = sphi 0, %s209
      %s226 = sphi 0, %s210
    $region4: #{tpu_custom_call.1} parent=1 // loop_header_branch
      %23 = sbr.rel (%p21) target = $region8
    $region5: #{tpu_custom_call.1} parent=1 // loop_body
      %s25 = ssub.s32 %s20, 1
      %s26 = ssub.s32 %s20, 2
      %s33 = sadd.s32 1, %s28
      %p34 = scmp.ge.s32.totalorder %s33, 2
      %s35 = scalar_select %p34, 0, %s33
      %s36 = sadd.s32 1, %s27
      %s37 = scalar_select %p34, %s36, %s27
      %p38 = scmp.ge.s32.totalorder %s37, 2
      %s39 = scalar_select %p38, 0, %s37
      %s40 = ssub.s32 %s27, %s39
      %p41 = scmp.eq.s32.totalorder %s40, 0
      %s43 = sadd.s32 %s42, 1
      %s44 = scalar_select %p41, %s42, %s43
      %p47 = pneg %p41
      %p48 = scmp.eq.s32.totalorder %s20, 3
      %p49 = por %p47, %p48
      %p50 = scmp.ne.s32.totalorder %s42, %s45
      %p51 = scmp.eq.s32.totalorder %s20, 0
      %p52 = por %p50, %p51
      %p53 = scmp.ne.s32.totalorder %s42, %s45
      %p54 = scmp.eq.s32.totalorder %s25, 3
      %p55 = por %p53, %p54
      %p56 = scmp.ne.s32.totalorder %s45, %s46
      %p57 = scmp.eq.s32.totalorder %s25, 0
      %p58 = por %p56, %p57
      %p59 = scmp.ne.s32.totalorder %s45, %s46
      %p60 = scmp.eq.s32.totalorder %s26, 3
      %p61 = por %p59, %p60
      %p63 = scmp.ne.s32.totalorder %s46, %s62
      %p64 = scmp.eq.s32.totalorder %s26, 0
      %p65 = por %p63, %p64
      %s67 = sadd.s32 %s66, 1
      %p70 = scmp.eq.s32.totalorder %s20, 3
      %p71 = scmp.ne.s32.totalorder %s66, %s68
      %p72 = scmp.eq.s32.totalorder %s20, 0
      %p73 = por %p71, %p72
      %p74 = scmp.ne.s32.totalorder %s66, %s68
      %p75 = scmp.eq.s32.totalorder %s25, 3
      %p76 = por %p74, %p75
      %p77 = scmp.ne.s32.totalorder %s68, %s69
      %p78 = scmp.eq.s32.totalorder %s25, 0
      %p79 = por %p77, %p78
      %p80 = scmp.ne.s32.totalorder %s68, %s69
      %p81 = scmp.eq.s32.totalorder %s26, 3
      %p82 = por %p80, %p81
      %p84 = scmp.ne.s32.totalorder %s69, %s83
      %p85 = scmp.eq.s32.totalorder %s26, 0
      %p86 = por %p84, %p85
      %s88 = sadd.s32 %s87, 1
      %p91 = scmp.eq.s32.totalorder %s20, 3
      %p92 = scmp.ne.s32.totalorder %s87, %s89
      %p93 = scmp.eq.s32.totalorder %s20, 0
      %p94 = por %p92, %p93
      %p95 = scmp.ne.s32.totalorder %s87, %s89
      %p96 = scmp.eq.s32.totalorder %s25, 3
      %p97 = por %p95, %p96
      %p98 = scmp.ne.s32.totalorder %s89, %s90
      %p99 = scmp.eq.s32.totalorder %s25, 0
      %p100 = por %p98, %p99
      %p101 = scmp.ne.s32.totalorder %s89, %s90
      %p102 = scmp.eq.s32.totalorder %s26, 3
      %p103 = por %p101, %p102
      %p105 = scmp.ne.s32.totalorder %s90, %s104
      %p106 = scmp.eq.s32.totalorder %s26, 0
      %p107 = por %p105, %p106
      %s109 = sadd.s32 %s108, 1
      %p112 = scmp.eq.s32.totalorder %s20, 3
      %p113 = scmp.ne.s32.totalorder %s108, %s110
      %p114 = scmp.eq.s32.totalorder %s20, 0
      %p115 = por %p113, %p114
      %p116 = scmp.ne.s32.totalorder %s108, %s110
      %p117 = scmp.eq.s32.totalorder %s25, 3
      %p118 = por %p116, %p117
      %p119 = scmp.ne.s32.totalorder %s110, %s111
      %p120 = scmp.eq.s32.totalorder %s25, 0
      %p121 = por %p119, %p120
      %p122 = scmp.ne.s32.totalorder %s110, %s111
      %p123 = scmp.eq.s32.totalorder %s26, 3
      %p124 = por %p122, %p123
      %p126 = scmp.ne.s32.totalorder %s111, %s125
      %p127 = scmp.eq.s32.totalorder %s26, 0
      %p128 = por %p126, %p127
      %s130 = sadd.s32 %s129, 1
      %p133 = scmp.eq.s32.totalorder %s20, 3
      %p134 = scmp.ne.s32.totalorder %s129, %s131
      %p135 = scmp.eq.s32.totalorder %s20, 0
      %p136 = por %p134, %p135
      %p137 = scmp.ne.s32.totalorder %s129, %s131
      %p138 = scmp.eq.s32.totalorder %s25, 3
      %p139 = por %p137, %p138
      %p140 = scmp.ne.s32.totalorder %s131, %s132
      %p141 = scmp.eq.s32.totalorder %s25, 0
      %p142 = por %p140, %p141
      %p143 = scmp.ne.s32.totalorder %s131, %s132
      %p144 = scmp.eq.s32.totalorder %s26, 3
      %p145 = por %p143, %p144
      %p147 = scmp.ne.s32.totalorder %s132, %s146
      %p148 = scmp.eq.s32.totalorder %s26, 0
      %p149 = por %p147, %p148
      %s150 = ssub.s32 %s28, %s35
      %p151 = scmp.eq.s32.totalorder %s150, 0
      %s153 = sadd.s32 %s152, 1
      %s154 = scalar_select %p151, %s152, %s153
      %p157 = pneg %p151
      %p158 = scmp.eq.s32.totalorder %s20, 3
      %p159 = por %p157, %p158
      %p160 = scmp.ne.s32.totalorder %s152, %s155
      %p161 = scmp.eq.s32.totalorder %s20, 0
      %p162 = por %p160, %p161
      %p163 = scmp.ne.s32.totalorder %s152, %s155
      %p164 = scmp.eq.s32.totalorder %s25, 3
      %p165 = por %p163, %p164
      %p166 = scmp.ne.s32.totalorder %s155, %s156
      %p167 = scmp.eq.s32.totalorder %s25, 0
      %p168 = por %p166, %p167
      %p169 = scmp.ne.s32.totalorder %s155, %s156
      %p170 = scmp.eq.s32.totalorder %s26, 3
      %p171 = por %p169, %p170
      %p173 = scmp.ne.s32.totalorder %s156, %s172
      %p174 = scmp.eq.s32.totalorder %s26, 0
      %p175 = por %p173, %p174
      %s176 = ssub.s32 %s28, %s35
      %p177 = scmp.eq.s32.totalorder %s176, 0
      %s179 = sadd.s32 %s178, 1
      %s180 = scalar_select %p177, %s178, %s179
      %p183 = pneg %p177
      %p184 = scmp.eq.s32.totalorder %s20, 3
      %p185 = por %p183, %p184
      %p186 = scmp.ne.s32.totalorder %s178, %s181
      %p187 = scmp.eq.s32.totalorder %s20, 0
      %p188 = por %p186, %p187
      %p189 = scmp.ne.s32.totalorder %s178, %s181
      %p190 = scmp.eq.s32.totalorder %s25, 3
      %p191 = por %p189, %p190
      %p192 = scmp.ne.s32.totalorder %s181, %s182
      %p193 = scmp.eq.s32.totalorder %s25, 0
      %p194 = por %p192, %p193
      %p195 = scmp.ne.s32.totalorder %s181, %s182
      %p196 = scmp.eq.s32.totalorder %s26, 3
      %p197 = por %p195, %p196
      %p199 = scmp.ne.s32.totalorder %s182, %s198
      %p200 = scmp.eq.s32.totalorder %s26, 0
      %p201 = por %p199, %p200
      %s202 = ssub.s32 %s27, %s39
      %s203 = ssub.s32 %s28, %s35
      %s204 = sor.u32 %s202, %s203
      %p205 = scmp.eq.s32.totalorder %s204, 0
      %s207 = sadd.s32 %s206, 1
      %s208 = scalar_select %p205, %s206, %s207
      %p211 = pneg %p205
      %p212 = scmp.eq.s32.totalorder %s20, 3
      %p213 = por %p211, %p212
      %p214 = scmp.ne.s32.totalorder %s206, %s209
      %p215 = scmp.eq.s32.totalorder %s20, 0
      %p216 = por %p214, %p215
      %p217 = scmp.ne.s32.totalorder %s206, %s209
      %p218 = scmp.eq.s32.totalorder %s25, 3
      %p219 = por %p217, %p218
      %p220 = scmp.ne.s32.totalorder %s209, %s210
      %p221 = scmp.eq.s32.totalorder %s25, 0
      %p222 = por %p220, %p221
      %p223 = scmp.ne.s32.totalorder %s209, %s210
      %p224 = scmp.eq.s32.totalorder %s26, 3
      %p225 = por %p223, %p224
      %p227 = scmp.ne.s32.totalorder %s210, %s226
      %p228 = scmp.eq.s32.totalorder %s26, 0
      %p229 = por %p227, %p228
      %p230 = scmp.le.s32.totalorder 1, %s20
      %p231 = scmp.lt.s32.totalorder %s20, 5
      %p232 = pnand %p230, %p231
      %p233 = pneg %p232
      // Predicated region
      $region9: #{tpu_custom_call.1} parent=5 // pred_check
        _
      $region10: #{tpu_custom_call.1} parent=5 // pred_check_branch
        %235 = sbr.rel (%p232) target = $region12
      $region11: #{tpu_custom_call.1} parent=5 // pred_region
        %s236 = ssub.s32 %s20, 1
        // Predicated region
        $region13: #{tpu_custom_call.1} parent=11 // pred_check
          %p237 = pneg %p79
        $region14: #{tpu_custom_call.1} parent=11 // pred_check_branch
          %239 = sbr.rel (%p237) target = $region16
        $region15: #{tpu_custom_call.1} parent=11 // pred_region
          %s241 = ssub.s32 512, 512
          %242 = vsyncadd [#allocation7], %s241
          %s243 = sshll.u32 [#allocation6], 4
          %s244 = int_to_ptr.vmem [resolvable:$true] %s243
          %249 = dma.hbm_to_vmem [thread:$0]  %s1, 512, %s244, [#allocation7], 128, 128, 8
        $region16: #{tpu_custom_call.1} parent=11 // pred_fallthru
          _
        // Predicated region
        $region17: #{tpu_custom_call.1} parent=11 // pred_check
          %p250 = pneg %p100
        $region18: #{tpu_custom_call.1} parent=11 // pred_check_branch
          %252 = sbr.rel (%p250) target = $region20
        $region19: #{tpu_custom_call.1} parent=11 // pred_region
          _
        $region20: #{tpu_custom_call.1} parent=11 // pred_fallthru
          _
        // Predicated region
        $region21: #{tpu_custom_call.1} parent=11 // pred_check
          %p253 = pneg %p121
        $region22: #{tpu_custom_call.1} parent=11 // pred_check_branch
          %255 = sbr.rel (%p253) target = $region24
        $region23: #{tpu_custom_call.1} parent=11 // pred_region
          _
        $region24: #{tpu_custom_call.1} parent=11 // pred_fallthru
          _
        // Predicated region
        $region25: #{tpu_custom_call.1} parent=11 // pred_check
          %p256 = pneg %p142
        $region26: #{tpu_custom_call.1} parent=11 // pred_check_branch
          %258 = sbr.rel (%p256) target = $region28
        $region27: #{tpu_custom_call.1} parent=11 // pred_region
          _
        $region28: #{tpu_custom_call.1} parent=11 // pred_fallthru
          _
      $region12: #{tpu_custom_call.1} parent=5 // pred_fallthru
        _
      %p259 = scmp.lt.s32.totalorder %s20, 4
      // Predicated region
      $region29: #{tpu_custom_call.1} parent=5 // pred_check
        %p260 = pneg %p259
      $region30: #{tpu_custom_call.1} parent=5 // pred_check_branch
        %262 = sbr.rel (%p260) target = $region32
      $region31: #{tpu_custom_call.1} parent=5 // pred_region
        // Predicated region
        $region33: #{tpu_custom_call.1} parent=31 // pred_check
          %p263 = pneg %p52
        $region34: #{tpu_custom_call.1} parent=31 // pred_check_branch
          %265 = sbr.rel (%p263) target = $region36
        $region35: #{tpu_custom_call.1} parent=31 // pred_region
          %s266 = sand.u32 %s20, 1
          %s267 = scalar_lea.sflag [#allocation4], %s266
          %s268 = sand.u32 %s42, 1
          %s269 = smul.addr %s268, 8
          %s270 = scalar_lea.vmem [#allocation3], %s269
          %s272 = ssub.s32 128, 128
          %273 = vsyncadd %s267, %s272
          %s274 = smul.addr %s27, 128
          %s275 = scalar_lea.hbm %s0, %s274
          %s277 = sshll.u32 %s270, 4
          %s278 = int_to_ptr.vmem [resolvable:$true] %s277
          %280 = dma.hbm_to_vmem [thread:$0]  %s275, 128, %s278, %s267
        $region36: #{tpu_custom_call.1} parent=31 // pred_fallthru
          _
        // Predicated region
        $region37: #{tpu_custom_call.1} parent=31 // pred_check
          %p281 = pneg %p162
        $region38: #{tpu_custom_call.1} parent=31 // pred_check_branch
          %283 = sbr.rel (%p281) target = $region40
        $region39: #{tpu_custom_call.1} parent=31 // pred_region
          %s284 = sand.u32 %s20, 1
          %s285 = scalar_lea.sflag [#allocation4], %s284
          %s286 = sand.u32 %s152, 1
          %s287 = smul.addr %s286, 32
          %s288 = scalar_lea.vmem [#allocation8], %s287
          %s290 = ssub.s32 512, 512
          %291 = vsyncadd %s285, %s290
          %s292 = smul.addr %s28, 128
          %s293 = scalar_lea.hbm %s5, %s292
          %s294 = sshll.u32 %s288, 4
          %s295 = int_to_ptr.vmem [resolvable:$true] %s294
          %300 = dma.hbm_to_vmem [thread:$0]  %s293, 512, %s295, %s285, 256, 128, 8
        $region40: #{tpu_custom_call.1} parent=31 // pred_fallthru
          _
        // Predicated region
        $region41: #{tpu_custom_call.1} parent=31 // pred_check
          %p301 = pneg %p188
        $region42: #{tpu_custom_call.1} parent=31 // pred_check_branch
          %303 = sbr.rel (%p301) target = $region44
        $region43: #{tpu_custom_call.1} parent=31 // pred_region
          %p304 = scmp.lt.s32.totalorder %s28, 1
          %s305 = scalar_select %p304, %s28, 1
          %s306 = scalar_lea.vmem %s6, %s305
        $region44: #{tpu_custom_call.1} parent=31 // pred_fallthru
          _
      $region32: #{tpu_custom_call.1} parent=5 // pred_fallthru
        _
      %p307 = scmp.le.s32.totalorder 1, %s20
      %p308 = scmp.lt.s32.totalorder %s20, 5
      %p309 = pnand %p307, %p308
      %p310 = pneg %p309
      // Predicated region
      $region45: #{tpu_custom_call.1} parent=5 // pred_check
        _
      $region46: #{tpu_custom_call.1} parent=5 // pred_check_branch
        %312 = sbr.rel (%p309) target = $region48
      $region47: #{tpu_custom_call.1} parent=5 // pred_region
        %s313 = ssub.s32 %s20, 1
        %s314 = sand.u32 %s25, 1
        %s315 = scalar_lea.sflag [#allocation4], %s314
        %s316 = sand.u32 %s45, 1
        %s317 = smul.addr %s316, 8
        %s318 = scalar_lea.vmem [#allocation3], %s317
        // Predicated region
        $region49: #{tpu_custom_call.1} parent=47 // pred_check
          %p319 = pneg %p58
        $region50: #{tpu_custom_call.1} parent=47 // pred_check_branch
          %321 = sbr.rel (%p319) target = $region52
        $region51: #{tpu_custom_call.1} parent=47 // pred_region
          %322 = dma.done %s315, 128
        $region52: #{tpu_custom_call.1} parent=47 // pred_fallthru
          _
        // Predicated region
        $region53: #{tpu_custom_call.1} parent=47 // pred_check
          %p323 = pneg %p79
        $region54: #{tpu_custom_call.1} parent=47 // pred_check_branch
          %325 = sbr.rel (%p323) target = $region56
        $region55: #{tpu_custom_call.1} parent=47 // pred_region
          %326 = dma.done [#allocation7], 512
        $region56: #{tpu_custom_call.1} parent=47 // pred_fallthru
          _
        %s327 = sand.u32 %s25, 1
        %s328 = scalar_lea.sflag [#allocation4], %s327
        %s329 = sand.u32 %s155, 1
        %s330 = smul.addr %s329, 32
        %s331 = scalar_lea.vmem [#allocation8], %s330
        // Predicated region
        $region57: #{tpu_custom_call.1} parent=47 // pred_check
          %p332 = pneg %p168
        $region58: #{tpu_custom_call.1} parent=47 // pred_check_branch
          %334 = sbr.rel (%p332) target = $region60
        $region59: #{tpu_custom_call.1} parent=47 // pred_region
          %335 = dma.done %s328, 512
        $region60: #{tpu_custom_call.1} parent=47 // pred_fallthru
          _
        %s336 = sand.u32 %s25, 1
        %s337 = scalar_lea.sflag [#allocation4], %s336
        %s338 = sand.u32 %s45, 1
        %s339 = smul.addr %s338, 8
        %s340 = scalar_lea.vmem [#allocation3], %s339
        %p341 = pneg %p58
        %p342 = pneg %p55
        %p343 = pneg %p79
        %p344 = pneg %p76
        %p345 = pneg %p100
        %p346 = pneg %p97
        %p347 = pneg %p121
        %p348 = pneg %p118
        %p349 = pneg %p142
        %p350 = pneg %p139
        %s351 = sand.u32 %s25, 1
        %s352 = scalar_lea.sflag [#allocation4], %s351
        %s353 = sand.u32 %s155, 1
        %s354 = smul.addr %s353, 32
        %s355 = scalar_lea.vmem [#allocation8], %s354
        %p356 = pneg %p168
        %p357 = pneg %p165
        %p358 = scmp.lt.s32.totalorder %s30, 1
        %s359 = scalar_select %p358, %s30, 1
        %s360 = scalar_lea.vmem %s6, %s359
        %p361 = pneg %p194
        %p362 = pneg %p191
        %p363 = pneg %p222
        %p364 = pneg %p219
        %s365 = sand.u32 %s209, 1
        %s366 = scalar_lea.sflag [#allocation5], %s365
        %s367 = sand.u32 %s209, 1
        %s368 = smul.addr %s367, 8
        %s369 = scalar_lea.vmem [#allocation9], %s368
        %p370 = scmp.lt.s32.totalorder %s30, 1
        %s371 = scalar_select %p370, %s30, 1
        %s372 = scalar_lea.vmem %s6, %s371
        %p373 = scmp.eq.s32.totalorder %s30, 0
        // Predicated region
        $region61: #{tpu_custom_call.1} parent=47 // pred_check
          %p374 = pneg %p373
        $region62: #{tpu_custom_call.1} parent=47 // pred_check_branch
          %376 = sbr.rel (%p374) target = $region64
        $region63: #{tpu_custom_call.1} parent=47 // pred_region
          %v377 = vld [vmem:[%s318] sm:$0xff]
          %v378 = vld [vmem:[#allocation6] sm:$0xff]
          %v379 = vld [vmem:[#allocation6 + $0x8] sm:$0xff]
          %v380 = vld [vmem:[#allocation6 + $0x10] sm:$0xff]
          %v381 = vld [vmem:[#allocation6 + $0x18] sm:$0xff]
          %v382 = vld [vmem:[%s2] sm:$0x1]
          %v384 = vlaneseq
          %v385 = vshrl.u32 %v384, 7
          %v386 = vsub.s32 0, %v385
          %v387 = vrot.slane %v382, %v386
          %vm389 = vcmask 261120
          %v391 = vsel %vm389, %v377, 0
          %393 = vmatprep.subr.mxu0 0.0
          %394 = vmatpush1.msra.mxu0 0.0
          %395 = vmatprep.subr.mxu0 0.0
          %396 = vmatpush1.msra.mxu0 0.0
          %397 = vmatprep.subr.mxu0 0.0
          %398 = vmatpush1.msra.mxu0 0.0
          %399 = vmatprep.subr.mxu0 0.0
          %400 = vmatpush1.msra.mxu0 0.0
          %401 = vmatprep.subr.mxu0 0.0
          %402 = vmatpush1.msra.mxu0 0.0
          %403 = vmatprep.subr.mxu0 0.0
          %404 = vmatpush1.msra.mxu0 0.0
          %405 = vmatprep.subr.mxu0 0.0
          %406 = vmatpush1.msra.mxu0 0.0
          %407 = vmatprep.subr.mxu0 0.0
          %408 = vmatpush1.msra.mxu0 0.0
          %409 = vmatprep.subr.mxu0 0.0
          %410 = vmatpush1.msra.mxu0 0.0
          %411 = vmatprep.subr.mxu0 0.0
          %412 = vmatpush1.msra.mxu0 0.0
          %413 = vmatprep.subr.mxu0 0.0
          %414 = vmatpush1.msra.mxu0 0.0
          %415 = vmatprep.subr.mxu0 0.0
          %416 = vmatpush1.msra.mxu0 0.0
          %417 = vmatprep.subr.mxu0 0.0
          %418 = vmatpush1.msra.mxu0 %v381
          %419 = vmatprep.subr.mxu0 0.0
          %420 = vmatpush1.msra.mxu0 %v380
          %421 = vmatprep.subr.mxu0 0.0
          %422 = vmatpush1.msra.mxu0 %v379
          %423 = vmatprep.subr.mxu0 0.0
          %424 = vmatpush1.msra.mxu0 %v378
          %425 = vmatprep.subr.mxu0 0.0
          %426 = vmatpush2.msra.mxu0 0.0
          %427 = vmatprep.subr.mxu0 0.0
          %428 = vmatpush2.msra.mxu0 0.0
          %429 = vmatprep.subr.mxu0 0.0
          %430 = vmatpush2.msra.mxu0 0.0
          %431 = vmatprep.subr.mxu0 0.0
          %432 = vmatpush2.msra.mxu0 0.0
          %433 = vmatprep.subr.mxu0 0.0
          %434 = vmatpush2.msra.mxu0 0.0
          %435 = vmatprep.subr.mxu0 0.0
          %436 = vmatpush2.msra.mxu0 0.0
          %437 = vmatprep.subr.mxu0 0.0
          %438 = vmatpush2.msra.mxu0 0.0
          %439 = vmatprep.subr.mxu0 0.0
          %440 = vmatpush2.msra.mxu0 0.0
          %441 = vmatprep.subr.mxu0 0.0
          %442 = vmatpush2.msra.mxu0 0.0
          %443 = vmatprep.subr.mxu0 0.0
          %444 = vmatpush2.msra.mxu0 0.0
          %445 = vmatprep.subr.mxu0 0.0
          %446 = vmatpush2.msra.mxu0 0.0
          %447 = vmatprep.subr.mxu0 0.0
          %448 = vmatpush2.msra.mxu0 0.0
          %449 = vmatprep.subr.mxu0 0.0
          %450 = vmatpush2.msra.mxu0 0.0
          %451 = vmatprep.subr.mxu0 0.0
          %452 = vmatpush2.msra.mxu0 0.0
          %453 = vmatprep.subr.mxu0 0.0
          %454 = vmatpush2.msra.mxu0 0.0
          %455 = vmatprep.subr.mxu0 0.0
          %456 = vmatpush2.msra.mxu0 0.0
          %457 = vmatprep.mubr.f32.mxu0 0.0
          %458 = vmatmul.mubr.f32.gmra.mxu0 %v391
          %v459 = vpop.f32.mrf.mxu0
          %v460 = vadd.f32 %v387, %v459
          %v461 = vpop.f32.mrf.mxu0
          %462 = vdwg.mxu0
          %v463 = vmul.f32 %v460, 0.5
          %v464 = vmul.f32 %v460, 0.70710677
          %vm465 = vcmp.ge.f32.partialorder %v464, 0.0
          %v466 = vsub.f32 0.0, %v464
          %v467 = vsel %vm465, %v464, %v466
          %v468 = vmul.f32 %v467, 0.3275911
          %v469 = vadd.f32 %v468, 1.0
          %v470 = vrcp.pop %v469
          %v471 = vmul.f32 1.0, %v470
          %v472 = vmul.f32 %v471, 1.0614054
          %v473 = vadd.f32 %v472, -1.4531521
          %v474 = vmul.f32 %v473, %v471
          %v475 = vadd.f32 %v474, 1.4214138
          %v476 = vmul.f32 %v475, %v471
          %v477 = vadd.f32 %v476, -0.28449672
          %v478 = vmul.f32 %v477, %v471
          %v479 = vadd.f32 %v478, 0.2548296
          %v480 = vmul.f32 %v479, %v471
          %v481 = vsub.f32 0.0, %v467
          %v482 = vmul.f32 %v481, %v467
          %v483 = vmul.f32 %v482, 1.442695
          %v484 = vpow.pop %v483
          %v485 = vmul.f32 %v480, %v484
          %v486 = vsub.f32 1.0, %v485
          %v487 = vsub.f32 0.0, %v486
          %v488 = vsel %vm465, %v486, %v487
          %v489 = vadd.f32 %v488, 1.0
          %v490 = vmul.f32 %v463, %v489
          %v491 = vsel %vm389, %v490, 0.0
          %492 = vadd.xlane.f32.xlu0 %v491
          %v493 = vpop.xlane.xlu0 %492
          %v494 = vrcp.pop 32.0
          %v495 = vmul.f32 %v493, %v494
          %v496 = vsub.f32 %v490, %v495
          %v497 = vmul.f32 %v496, %v496
          %v498 = vsel %vm389, %v497, 0.0
          %499 = vadd.xlane.f32.xlu0 %v498
          %v500 = vpop.xlane.xlu0 %499
          %v501 = vmul.f32 %v500, %v494
          %v502 = vadd.f32 %v501, 1e-12
          %v503 = vrsqrt.pop %v502
          %v504 = vmul.f32 %v496, %v503
          %v505 = vld [vmem:[%s3] sm:$0x1]
          %v507 = vlaneseq
          %v508 = vshrl.u32 %v507, 7
          %v509 = vsub.s32 0, %v508
          %v510 = vrot.slane %v505, %v509
          %v512 = vmul.f32 %v504, %v510
          %v513 = vld [vmem:[%s4] sm:$0x1]
          %v515 = vlaneseq
          %v516 = vshrl.u32 %v515, 7
          %v517 = vsub.s32 0, %v516
          %v518 = vrot.slane %v513, %v517
          %v520 = vadd.f32 %v512, %v518
          %521 = vst.msk [vmem:[#allocation2] sm:$0xff] %vm389, %v520
        $region64: #{tpu_custom_call.1} parent=47 // pred_fallthru
          _
        %v522 = vld [vmem:[#allocation2] sm:$0xff]
        %v523 = vld [vmem:[%s331] sm:$0xff]
        %v524 = vld [vmem:[%s331 + $0x8] sm:$0xff]
        %v525 = vld [vmem:[%s331 + $0x10] sm:$0xff]
        %v526 = vld [vmem:[%s331 + $0x18] sm:$0xff]
        %v527 = vld [vmem:[%s372] sm:$0x1]
        %v529 = vlaneseq
        %v530 = vshrl.u32 %v529, 7
        %v531 = vsub.s32 0, %v530
        %v532 = vrot.slane %v527, %v531
        %vm534 = vcmask 261120
        %v536 = vsel %vm534, %v522, 0
        %538 = vmatprep.subr.mxu0 0.0
        %539 = vmatpush1.msra.mxu0 0.0
        %540 = vmatprep.subr.mxu0 0.0
        %541 = vmatpush1.msra.mxu0 0.0
        %542 = vmatprep.subr.mxu0 0.0
        %543 = vmatpush1.msra.mxu0 0.0
        %544 = vmatprep.subr.mxu0 0.0
        %545 = vmatpush1.msra.mxu0 0.0
        %546 = vmatprep.subr.mxu0 0.0
        %547 = vmatpush1.msra.mxu0 0.0
        %548 = vmatprep.subr.mxu0 0.0
        %549 = vmatpush1.msra.mxu0 0.0
        %550 = vmatprep.subr.mxu0 0.0
        %551 = vmatpush1.msra.mxu0 0.0
        %552 = vmatprep.subr.mxu0 0.0
        %553 = vmatpush1.msra.mxu0 0.0
        %554 = vmatprep.subr.mxu0 0.0
        %555 = vmatpush1.msra.mxu0 0.0
        %556 = vmatprep.subr.mxu0 0.0
        %557 = vmatpush1.msra.mxu0 0.0
        %558 = vmatprep.subr.mxu0 0.0
        %559 = vmatpush1.msra.mxu0 0.0
        %560 = vmatprep.subr.mxu0 0.0
        %561 = vmatpush1.msra.mxu0 0.0
        %562 = vmatprep.subr.mxu0 0.0
        %563 = vmatpush1.msra.mxu0 %v526
        %564 = vmatprep.subr.mxu0 0.0
        %565 = vmatpush1.msra.mxu0 %v525
        %566 = vmatprep.subr.mxu0 0.0
        %567 = vmatpush1.msra.mxu0 %v524
        %568 = vmatprep.subr.mxu0 0.0
        %569 = vmatpush1.msra.mxu0 %v523
        %570 = vmatprep.subr.mxu0 0.0
        %571 = vmatpush2.msra.mxu0 0.0
        %572 = vmatprep.subr.mxu0 0.0
        %573 = vmatpush2.msra.mxu0 0.0
        %574 = vmatprep.subr.mxu0 0.0
        %575 = vmatpush2.msra.mxu0 0.0
        %576 = vmatprep.subr.mxu0 0.0
        %577 = vmatpush2.msra.mxu0 0.0
        %578 = vmatprep.subr.mxu0 0.0
        %579 = vmatpush2.msra.mxu0 0.0
        %580 = vmatprep.subr.mxu0 0.0
        %581 = vmatpush2.msra.mxu0 0.0
        %582 = vmatprep.subr.mxu0 0.0
        %583 = vmatpush2.msra.mxu0 0.0
        %584 = vmatprep.subr.mxu0 0.0
        %585 = vmatpush2.msra.mxu0 0.0
        %586 = vmatprep.subr.mxu0 0.0
        %587 = vmatpush2.msra.mxu0 0.0
        %588 = vmatprep.subr.mxu0 0.0
        %589 = vmatpush2.msra.mxu0 0.0
        %590 = vmatprep.subr.mxu0 0.0
        %591 = vmatpush2.msra.mxu0 0.0
        %592 = vmatprep.subr.mxu0 0.0
        %593 = vmatpush2.msra.mxu0 0.0
        %594 = vmatprep.subr.mxu0 0.0
        %595 = vmatpush2.msra.mxu0 0.0
        %596 = vmatprep.subr.mxu0 0.0
        %597 = vmatpush2.msra.mxu0 0.0
        %598 = vmatprep.subr.mxu0 0.0
        %599 = vmatpush2.msra.mxu0 0.0
        %600 = vmatprep.subr.mxu0 0.0
        %601 = vmatpush2.msra.mxu0 0.0
        %602 = vmatprep.mubr.f32.mxu0 0.0
        %603 = vmatmul.mubr.f32.gmra.mxu0 %v536
        %v604 = vpop.f32.mrf.mxu0
        %v605 = vadd.f32 %v532, %v604
        %v606 = vpop.f32.mrf.mxu0
        %607 = vdwg.mxu0
        %608 = vst [vmem:[%s369] sm:$0xff] %v605
        %s609 = sand.u32 %s209, 1
        %s610 = scalar_lea.sflag [#allocation5], %s609
        %s611 = sand.u32 %s209, 1
        %s612 = smul.addr %s611, 8
        %s613 = scalar_lea.vmem [#allocation9], %s612
        // Predicated region
        $region65: #{tpu_custom_call.1} parent=47 // pred_check
          %p614 = pneg %p219
        $region66: #{tpu_custom_call.1} parent=47 // pred_check_branch
          %616 = sbr.rel (%p614) target = $region68
        $region67: #{tpu_custom_call.1} parent=47 // pred_region
          %s618 = ssub.s32 128, 128
          %619 = vsyncadd %s610, %s618
          %s620 = smul.addr %s29, 2
          %s621 = sadd.s32 %s30, %s620
          %s622 = smul.addr %s621, 128
          %s623 = scalar_lea.hbm %s7, %s622
          %s625 = sshll.u32 %s613, 4
          %s626 = int_to_ptr.vmem [resolvable:$true] %s625
          %628 = dma.vmem_to_hbm [thread:$0]  %s626, 128, %s623, %s610
        $region68: #{tpu_custom_call.1} parent=47 // pred_fallthru
          _
      $region48: #{tpu_custom_call.1} parent=5 // pred_fallthru
        _
      %p629 = scmp.le.s32.totalorder 2, %s20
      // Predicated region
      $region69: #{tpu_custom_call.1} parent=5 // pred_check
        %p630 = pneg %p629
      $region70: #{tpu_custom_call.1} parent=5 // pred_check_branch
        %632 = sbr.rel (%p630) target = $region72
      $region71: #{tpu_custom_call.1} parent=5 // pred_region
        %s633 = ssub.s32 %s20, 2
        // Predicated region
        $region73: #{tpu_custom_call.1} parent=71 // pred_check
          %p634 = pneg %p225
        $region74: #{tpu_custom_call.1} parent=71 // pred_check_branch
          %636 = sbr.rel (%p634) target = $region76
        $region75: #{tpu_custom_call.1} parent=71 // pred_region
          %s637 = sand.u32 %s210, 1
          %s638 = scalar_lea.sflag [#allocation5], %s637
          %s639 = sand.u32 %s210, 1
          %s640 = smul.addr %s639, 8
          %s641 = scalar_lea.vmem [#allocation9], %s640
          %642 = dma.done %s638, 128
        $region76: #{tpu_custom_call.1} parent=71 // pred_fallthru
          _
      $region72: #{tpu_custom_call.1} parent=5 // pred_fallthru
        _
    $region6: #{tpu_custom_call.1} parent=1 // loop_footer
      %s24 = sadd.s32 1, %s20
    $region7: #{tpu_custom_call.1} parent=1 // loop_footer_branch
      %19 = sbr.rel target = $region3
    $region8: #{tpu_custom_call.1} parent=1 // loop_exit
      _
    %643 = vsyncpa [#allocation4], 1
    %s644 = scalar_lea.sflag [#allocation4], 1
    %645 = vsyncpa %s644, 1
    %646 = vsyncpa [#allocation7], 1
    %647 = vsyncpa [#allocation5], 1
    %s648 = scalar_lea.sflag [#allocation5], 1
    %649 = vsyncpa %s648, 1

</llo_original>
